<compile_context>
chip_gen: v7x
topology: tpu7x:2x2x1
jax: 0.10.0
libtpu: 0.0.40
codegen_flags: <defaults>
</compile_context>

<pallas_src>
import math
import numpy as np
import jax
import jax.numpy as jnp
from jax.experimental import pallas as pl
from jax.experimental.pallas import tpu as pltpu


def _ceil_to(n, m):
    return ((n + m - 1) // m) * m


# -----------------------------------------------------------------------------
# Kernels
# -----------------------------------------------------------------------------
def _transition_kernel_pw(scale_ref, shift_ref, w_ref, pw_ref, x_ref, o_ref):
    """General path (handles ceil_mode partial windows for odd H/W).
    x_ref : (1, 4, Cin, Tm)  the four elements of each 2x2 pool window
    pw_ref: (4, 1, Tm)       per-element pool weight (0 or 1/valid_count)
    scale_ref / shift_ref: (Cin, 1)  folded eval-mode BatchNorm
    w_ref : (Cout, Cin)      1x1 conv weight
    o_ref : (1, Cout, Tm)
    """
    scale = scale_ref[...]
    shift = shift_ref[...]
    x = x_ref[0].astype(scale.dtype)                           # (4, Cin, Tm)
    y = jnp.maximum(x * scale + shift, 0)                      # BN + ReLU (VPU)
    pooled = jnp.sum(y * pw_ref[...], axis=0)                  # (Cin, Tm)
    z = jnp.dot(w_ref[...], pooled.astype(w_ref.dtype),
                preferred_element_type=jnp.float32)            # MXU, f32 acc
    o_ref[0] = z.astype(o_ref.dtype)


def _transition_kernel_even(scale_ref, shift_ref, w_ref, x_ref, o_ref):
    """Fast path for even H and W: every pool weight is 0.25 and the wrapper
    folds it into scale/shift, so the kernel only sums the 4 window elements
    (no per-element weight multiply, no pool-weight operand)."""
    scale = scale_ref[...]
    shift = shift_ref[...]
    x = x_ref[0].astype(scale.dtype)                           # (4, Cin, Tm)
    y = jnp.maximum(x * scale + shift, 0)
    pooled = jnp.sum(y, axis=0)                                # (Cin, Tm)
    z = jnp.dot(w_ref[...], pooled.astype(w_ref.dtype),
                preferred_element_type=jnp.float32)
    o_ref[0] = z.astype(o_ref.dtype)


# -----------------------------------------------------------------------------
# Wrapper
# -----------------------------------------------------------------------------
def _pool_weights(H, W):
    """(4, 1, Ho*Wo): element k of output window (i,j) gets 1/valid_count if it
    lies inside the HxW image, else 0 (PyTorch ceil_mode divisor, padding=0)."""
    Ho, Wo = -(-H // 2), -(-W // 2)
    ih = 2 * np.arange(Ho)
    iw = 2 * np.arange(Wo)
    cnt = (np.minimum(H - ih, 2)[:, None] *
           np.minimum(W - iw, 2)[None, :]).astype(np.float32)     # (Ho, Wo)
    pw = np.zeros((4, Ho, Wo), np.float32)
    k = 0
    for dh in (0, 1):
        for dw in (0, 1):
            valid = ((ih + dh)[:, None] < H) & ((iw + dw)[None, :] < W)
            pw[k] = valid.astype(np.float32) / cnt
            k += 1
    return jnp.asarray(pw.reshape(4, 1, Ho * Wo))


def transition_forward(x_nchw, gamma, beta, run_mean, run_var, conv_w,
                       eps=1e-5,
                       x_dtype=jnp.bfloat16,
                       compute_dtype=jnp.bfloat16,
                       matmul_dtype=jnp.bfloat16,
                       out_dtype=jnp.bfloat16,
                       tile_m=512,
                       vmem_limit_bytes=None):
    """Transition.forward: avg_pool2d(conv1x1(relu(bn(x))), 2, ceil_mode=True).

    Inference-oriented dtypes (per perf review): bf16 everywhere by default,
    f32 MXU accumulation.  Pooling happens in reduced precision before the
    conv, giving ~1e-2 relative error vs the f32 PyTorch reference.  Use f32
    for x/compute/matmul/out to get an exact validation path.  On v5e prefer
    compute_dtype=float32 (no bf16 VALU) but keep matmul_dtype=bfloat16 (f32
    MXU is emulated there).  tile_m: 512 for v7x, 1024-2048 on v5e/v6e.
    """
    N, Cin, H, W = x_nchw.shape
    Cout = conv_w.shape[0]
    Ho, Wo = -(-H // 2), -(-W // 2)
    M = Ho * Wo
    even = (H % 2 == 0) and (W % 2 == 0)

    # Fold eval-mode BatchNorm into per-channel scale/shift (f32, then cast).
    inv_std = (gamma.astype(jnp.float32) /
               jnp.sqrt(run_var.astype(jnp.float32) + eps))
    scale = inv_std
    shift = beta.astype(jnp.float32) - run_mean.astype(jnp.float32) * inv_std
    if even:
        # No partial windows: every pool weight is 0.25; fold it into the BN
        # affine (relu(0.25*a) == 0.25*relu(a); *0.25 is an exact fp rescale).
        scale, shift = 0.25 * scale, 0.25 * shift
    scale = scale.reshape(Cin, 1).astype(compute_dtype)
    shift = shift.reshape(Cin, 1).astype(compute_dtype)
    w_mat = conv_w.reshape(Cout, Cin).astype(matmul_dtype)

    # Regroup x so the four 2x2-window elements sit on a leading axis:
    #   (N, Cin, H, W) -> pad to even -> (N, 4, Cin, Ho*Wo), in x_dtype (bf16).
    # XLA fuses cast + pad + strided slices + stack into a single copy.  Zero
    # padding of odd dims is neutralised by the pool weights (weight 0 there).
    # TODO(synk): fuse this regroup+cast into the producer of x (or do it with
    # in-kernel strided DMAs) so x is read from HBM exactly once in the net.
    Hp, Wp = 2 * Ho, 2 * Wo
    xp = jnp.pad(x_nchw.astype(x_dtype),
                 ((0, 0), (0, 0), (0, Hp - H), (0, Wp - W)))
    parts = [xp[:, :, dh::2, dw::2] for dh in (0, 1) for dw in (0, 1)]
    x4 = jnp.stack(parts, axis=1).reshape(N, 4, Cin, M)

    # Spatial tiling: whole image if small, else 128-lane-aligned tiles.  For
    # N == 1 make sure the grid keeps >= 2 steps on a parallel axis so both
    # TensorCores of a v7x chip get work.
    if M > tile_m:
        Tm = max(128, (tile_m // 128) * 128)
    elif N == 1 and M > 128:
        Tm = _ceil_to(-(-M // 2), 128)
    else:
        Tm = M
        # TODO(synk): for N == 1 and M <= 128 the grid is (1, 1); if dual-TC
        # utilisation matters there, add a parallel grid axis over Cout blocks.
    grid = (N, pl.cdiv(M, Tm))

    common_specs = [
        # Constant index maps -> Pallas does not re-DMA these across the grid.
        pl.BlockSpec((Cin, 1), lambda n, m: (0, 0)),               # scale
        pl.BlockSpec((Cin, 1), lambda n, m: (0, 0)),               # shift
        pl.BlockSpec((Cout, Cin), lambda n, m: (0, 0)),            # conv w
    ]
    x_spec = pl.BlockSpec((1, 4, Cin, Tm), lambda n, m: (n, 0, 0, m))
    out_spec = pl.BlockSpec((1, Cout, Tm), lambda n, m: (n, 0, m))

    if even:
        kernel = _transition_kernel_even
        in_specs = common_specs + [x_spec]
        operands = (scale, shift, w_mat, x4)
        pw_shape = None
    else:
        pool_w = _pool_weights(H, W).astype(compute_dtype)         # (4, 1, M)
        kernel = _transition_kernel_pw
        in_specs = common_specs + [
            pl.BlockSpec((4, 1, Tm), lambda n, m: (0, 0, m)),      # pool w
            x_spec,
        ]
        operands = (scale, shift, w_mat, pool_w, x4)
        pw_shape = (4, 1, Tm)

    if vmem_limit_bytes is None:
        # Size the VMEM budget from the actual (double-buffered) tile footprint
        # plus headroom for Mosaic scratch, rather than claiming all of VMEM
        # (v7x only has 64 MiB physical per TensorCore).
        def buf_bytes(shape, dt):
            s = list(shape)
            s[-1] = _ceil_to(s[-1], 128)
            if len(s) >= 2:
                s[-2] = _ceil_to(s[-2], 16)
            size = 1
            for d in s:
                size *= d
            return size * jnp.dtype(dt).itemsize

        est = (2 * buf_bytes((Cin, 1), compute_dtype)
               + buf_bytes((Cout, Cin), matmul_dtype)
               + buf_bytes((1, 4, Cin, Tm), x_dtype)
               + buf_bytes((1, Cout, Tm), out_dtype))
        if pw_shape is not None:
            est += buf_bytes(pw_shape, compute_dtype)
        vmem_limit_bytes = int(
            min(112 * 2**20, max(16 * 2**20, 2 * est + 8 * 2**20)))

    out = pl.pallas_call(
        kernel,
        out_shape=jax.ShapeDtypeStruct((N, Cout, M), out_dtype),
        grid_spec=pltpu.PrefetchScalarGridSpec(
            num_scalar_prefetch=0,
            grid=grid,
            in_specs=in_specs,
            out_specs=out_spec,
        ),
        compiler_params=pltpu.CompilerParams(
            dimension_semantics=("parallel", "parallel"),
            vmem_limit_bytes=vmem_limit_bytes),
    )(*operands)

    # (N, Cout, Ho*Wo) -> (N, Cout, Ho, Wo): free contiguous reshape.
    return out.reshape(N, Cout, Ho, Wo)


# -----------------------------------------------------------------------------
# Pure-JAX reference (PyTorch op order: bn -> relu -> conv1x1 -> avg_pool2d)
# -----------------------------------------------------------------------------
def _ref_forward(x, gamma, beta, run_mean, run_var, conv_w, eps=1e-5):
    inv = gamma / jnp.sqrt(run_var + eps)
    y = (x - run_mean[None, :, None, None]) * inv[None, :, None, None] \
        + beta[None, :, None, None]
    y = jnp.maximum(y, 0.0)
    z = jnp.einsum('nchw,oc->nohw', y, conv_w.reshape(conv_w.shape[0], -1))
    N, Co, H, W = z.shape
    Ho, Wo = -(-H // 2), -(-W // 2)
    zp = jnp.pad(z, ((0, 0), (0, 0), (0, 2 * Ho - H), (0, 2 * Wo - W)))
    s = zp.reshape(N, Co, Ho, 2, Wo, 2).sum(axis=(3, 5))
    cnt = (jnp.minimum(H - 2 * jnp.arange(Ho), 2)[:, None] *
           jnp.minimum(W - 2 * jnp.arange(Wo), 2)[None, :]).astype(z.dtype)
    return s / cnt[None, None]


if __name__ == "__main__":
    def run_case(N, H, W, dt, tile_m, rtol, atol):
        Cin, Cout = 4, 8
        key = jax.random.PRNGKey(0)
        k_x, k_g, k_b, k_m, k_v, k_w = jax.random.split(key, 6)
        x = jax.random.normal(k_x, (N, Cin, H, W), dtype=jnp.float32)
        gamma = 1.0 + 0.1 * jax.random.normal(k_g, (Cin,), dtype=jnp.float32)
        beta = 0.1 * jax.random.normal(k_b, (Cin,), dtype=jnp.float32)
        run_mean = 0.1 * jax.random.normal(k_m, (Cin,), dtype=jnp.float32)
        run_var = jnp.abs(jax.random.normal(k_v, (Cin,), dtype=jnp.float32)) + 0.5
        # Conv2d(in, out, kernel_size=1, bias=False) weight: (Cout, Cin, 1, 1)
        conv_w = (jax.random.normal(k_w, (Cout, Cin, 1, 1), dtype=jnp.float32)
                  / math.sqrt(Cin))
        out = transition_forward(x, gamma, beta, run_mean, run_var, conv_w,
                                 x_dtype=dt, compute_dtype=dt,
                                 matmul_dtype=dt, out_dtype=dt,
                                 tile_m=tile_m)
        out = jax.block_until_ready(out)
        ref = _ref_forward(x, gamma, beta, run_mean, run_var, conv_w)
        assert out.shape == ref.shape, (out.shape, ref.shape)
        np.testing.assert_allclose(np.asarray(out.astype(jnp.float32)),
                                   np.asarray(ref), rtol=rtol, atol=atol)

    f32, bf16 = jnp.float32, jnp.bfloat16
    # Exact f32 path, even dims (no partial windows -> folded-0.25 fast kernel).
    run_case(2, 16, 16, f32, 512, 1e-5, 1e-5)
    # Exact f32 path, odd dims (ceil_mode partial windows -> pool-weight kernel).
    run_case(2, 9, 11, f32, 512, 1e-5, 1e-5)
    # Multi-tile spatial grid with a partial last tile (M=156 > Tm=128), odd dims.
    run_case(2, 23, 25, f32, 128, 1e-5, 1e-5)
    # Production path: x / VPU math / MXU operands / output all bf16.
    run_case(2, 16, 16, bf16, 512, 5e-2, 5e-2)
    # Single image: spatial axis split so the parallel grid keeps >= 2 steps.
    run_case(1, 32, 32, bf16, 512, 5e-2, 5e-2)
    print("KERNEL_OK")
</pallas_src>

<mosaic_0001>
module attributes {stable_mosaic.version = 11 : i64} {
  func.func @_transition_kernel_even(%arg0: i32, %arg1: i32, %arg2: memref<4x1xf32, #tpu.memory_space<vmem>>, %arg3: memref<4x1xf32, #tpu.memory_space<vmem>>, %arg4: memref<8x4xf32, #tpu.memory_space<vmem>>, %arg5: memref<1x4x4x64xf32, #tpu.memory_space<vmem>>, %arg6: memref<1x8x64xf32, #tpu.memory_space<vmem>>) attributes {dimension_semantics = [#tpu.dimension_semantics<parallel>, #tpu.dimension_semantics<parallel>], iteration_bounds = array<i64: 2, 1>, scalar_prefetch = 0 : i64, scratch_operands = 0 : i64, tpu.core_type = #tpu.core_type<tc>, window_params = [{pipeline_mode = #tpu.pipeline_mode<synchronous>, transform_indices = @transform_0, window_bounds = array<i64: 4, 1>}, {pipeline_mode = #tpu.pipeline_mode<synchronous>, transform_indices = @transform_1, window_bounds = array<i64: 4, 1>}, {pipeline_mode = #tpu.pipeline_mode<synchronous>, transform_indices = @transform_2, window_bounds = array<i64: 8, 4>}, {transform_indices = @transform_3, window_bounds = array<i64: 1, 4, 4, 64>}, {transform_indices = @transform_4, window_bounds = array<i64: 1, 8, 64>}]} {
    %c0 = arith.constant 0 : index
    %c0_0 = arith.constant 0 : index
    %0 = vector.load %arg2[%c0, %c0_0] : memref<4x1xf32, #tpu.memory_space<vmem>>, vector<4x1xf32>
    %c0_1 = arith.constant 0 : index
    %c0_2 = arith.constant 0 : index
    %1 = vector.load %arg3[%c0_1, %c0_2] : memref<4x1xf32, #tpu.memory_space<vmem>>, vector<4x1xf32>
    %c0_3 = arith.constant 0 : index
    %c0_4 = arith.constant 0 : index
    %c0_5 = arith.constant 0 : index
    %c0_6 = arith.constant 0 : index
    %2 = vector.load %arg5[%c0_3, %c0_4, %c0_5, %c0_6] : memref<1x4x4x64xf32, #tpu.memory_space<vmem>>, vector<1x4x4x64xf32>
    %3 = vector.shape_cast %2 : vector<1x4x4x64xf32> to vector<4x4x64xf32>
    %4 = vector.shape_cast %0 : vector<4x1xf32> to vector<1x4x1xf32>
    %5 = vector.broadcast %4 : vector<1x4x1xf32> to vector<4x4x64xf32>
    %6 = arith.mulf %3, %5 : vector<4x4x64xf32>
    %7 = vector.shape_cast %1 : vector<4x1xf32> to vector<1x4x1xf32>
    %8 = vector.broadcast %7 : vector<1x4x1xf32> to vector<4x4x64xf32>
    %9 = arith.addf %6, %8 : vector<4x4x64xf32>
    %cst = arith.constant 0.000000e+00 : f32
    %10 = vector.broadcast %cst : f32 to vector<4x4x64xf32>
    %11 = arith.maximumf %9, %10 : vector<4x4x64xf32>
    %cst_7 = arith.constant dense<0.000000e+00> : vector<4x64xf32>
    %12 = vector.multi_reduction <add>, %11, %cst_7 [0] : vector<4x4x64xf32> to vector<4x64xf32>
    %c0_8 = arith.constant 0 : index
    %c0_9 = arith.constant 0 : index
    %13 = vector.load %arg4[%c0_8, %c0_9] : memref<8x4xf32, #tpu.memory_space<vmem>>, vector<8x4xf32>
    %cst_10 = arith.constant dense<0.000000e+00> : vector<8x64xf32>
    %14 = tpu.matmul %13, %12, %cst_10 {dimension_numbers = #tpu.dot_dimension_numbers<[1], [0], [0], [1], [0, 0, 1, 1], [], []>} : vector<8x4xf32>, vector<4x64xf32>, vector<8x64xf32> -> vector<8x64xf32>
    %c0_11 = arith.constant 0 : index
    %c0_12 = arith.constant 0 : index
    %c0_13 = arith.constant 0 : index
    %15 = vector.load %arg6[%c0_11, %c0_12, %c0_13] : memref<1x8x64xf32, #tpu.memory_space<vmem>>, vector<1x8x64xf32>
    %16 = vector.shape_cast %15 : vector<1x8x64xf32> to vector<8x64xf32>
    %17 = vector.shape_cast %14 : vector<8x64xf32> to vector<1x8x64xf32>
    tpu.vector_store %arg6[%c0_11, %c0_12, %c0_13], %17 {strides = array<i32>} : memref<1x8x64xf32, #tpu.memory_space<vmem>>, vector<1x8x64xf32>,
    return
  }
  func.func @transform_0(%arg0: i32, %arg1: i32) -> (i32, i32) {
    %c0_i32 = arith.constant 0 : i32
    %c0_i32_0 = arith.constant 0 : i32
    %c0_i32_1 = arith.constant 0 : i32
    return %c0_i32, %c0_i32_0 : i32, i32
  }
  func.func @transform_1(%arg0: i32, %arg1: i32) -> (i32, i32) {
    %c0_i32 = arith.constant 0 : i32
    %c0_i32_0 = arith.constant 0 : i32
    %c0_i32_1 = arith.constant 0 : i32
    return %c0_i32, %c0_i32_0 : i32, i32
  }
  func.func @transform_2(%arg0: i32, %arg1: i32) -> (i32, i32) {
    %c0_i32 = arith.constant 0 : i32
    %c0_i32_0 = arith.constant 0 : i32
    %c0_i32_1 = arith.constant 0 : i32
    return %c0_i32, %c0_i32_0 : i32, i32
  }
  func.func @transform_3(%arg0: i32, %arg1: i32) -> (i32, i32, i32, i32) {
    %c0_i32 = arith.constant 0 : i32
    %c0_i32_0 = arith.constant 0 : i32
    %c0_i32_1 = arith.constant 0 : i32
    return %arg0, %c0_i32, %c0_i32_0, %arg1 : i32, i32, i32, i32
  }
  func.func @transform_4(%arg0: i32, %arg1: i32) -> (i32, i32, i32) {
    %c0_i32 = arith.constant 0 : i32
    %c0_i32_0 = arith.constant 0 : i32
    return %arg0, %c0_i32, %arg1 : i32, i32, i32
  }
}

</mosaic_0001>

<llo_original>
// kernel: tpu_custom_call.1
$region0: #{tpu_custom_call.1}
  #allocation0 [shape = 'u32[]', space=smem, size = 0x4, offset = 0x4, fixed_abs, tag = 'smem constant byte address 0x4 - core index']
  #allocation1 [shape = 'u32[144,128]{1,0:T(1,128)}', space=vmem, size = 0x12000, scoped, tag = 'internal scratch']
  %s0 = inlined_call_operand.vmem [shape: f32[4,1], index: 0, kind: input, shape index: {}]
  %s1 = inlined_call_operand.vmem [shape: f32[4,1], index: 1, kind: input, shape index: {}]
  %s2 = inlined_call_operand.vmem [shape: f32[8,4], index: 2, kind: input, shape index: {}]
  %s3 = inlined_call_operand.vmem [shape: f32[2,4,4,64], index: 3, kind: input, shape index: {}]
  %s4 = inlined_call_operand.hbm [shape: f32[2,8,64], index: 4, kind: output, shape index: {}]
  %s5 = sld [smem:[#allocation0]]
  $region49: #{tpu_custom_call.1} parent=0
    _
  %s7 = ssub.s32 1, %s5
  %s8 = scalar_select 0, %s7, %s5
  $region1: #{tpu_custom_call.1} parent=0
    #allocation2 [shape = 'u8[8192]{0}', space=vmem, size = 0x2000, scoped, tag = 'output window, operand 0']
    #allocation3 [shape = 's32[2]{0}', space=sflag, size = 0x8, scoped, tag = 'scoped memory for tpu_custom_call.1']
    %9 = vsyncpa [#allocation3], 0
    %s10 = scalar_lea.sflag [#allocation3], 1
    %11 = vsyncpa %s10, 0
    loop: start=0, step=1, limit=4
    $region2: #{tpu_custom_call.1} parent=1 // loop_pre_header
      _
    $region3: #{tpu_custom_call.1} parent=1 // loop_header
      %s13 = sphi 0, %s17
      %p14 = scmp.ge.s32.totalorder %s13, 4
      %s20 = sphi 0, %s32
      %s21 = sphi 0, %s28
      %s22 = sphi 0, %s20
      %s23 = sphi 0, %s21
      %s24 = sphi 0, %s22
      %s25 = sphi 0, %s23
      %s33 = sphi 0, %s33
      %s35 = sphi 0, %s33
      %s36 = sphi 0, %s35
      %s50 = sphi 0, %s36
      %s54 = sphi 0, %s54
      %s56 = sphi 0, %s54
      %s57 = sphi 0, %s56
      %s71 = sphi 0, %s57
      %s75 = sphi 0, %s75
      %s77 = sphi 0, %s75
      %s78 = sphi 0, %s77
      %s92 = sphi 0, %s78
      %s100 = sphi 0, %s102
      %s103 = sphi 0, %s100
      %s104 = sphi 0, %s103
      %s120 = sphi 0, %s104
      %s128 = sphi 0, %s130
      %s131 = sphi 0, %s128
      %s132 = sphi 0, %s131
      %s148 = sphi 0, %s132
    $region4: #{tpu_custom_call.1} parent=1 // loop_header_branch
      %16 = sbr.rel (%p14) target = $region8
    $region5: #{tpu_custom_call.1} parent=1 // loop_body
      %s18 = ssub.s32 %s13, 1
      %s19 = ssub.s32 %s13, 2
      %s26 = sadd.s32 1, %s21
      %p27 = scmp.ge.s32.totalorder %s26, 1
      %s28 = scalar_select %p27, 0, %s26
      %s29 = sadd.s32 1, %s20
      %s30 = scalar_select %p27, %s29, %s20
      %p31 = scmp.ge.s32.totalorder %s30, 2
      %s32 = scalar_select %p31, 0, %s30
      %s34 = sadd.s32 %s33, 1
      %p37 = scmp.eq.s32.totalorder %s13, 1
      %p38 = scmp.ne.s32.totalorder %s33, %s35
      %p39 = scmp.eq.s32.totalorder %s13, 0
      %p40 = por %p38, %p39
      %p41 = scmp.ne.s32.totalorder %s33, %s35
      %p42 = scmp.eq.s32.totalorder %s18, 1
      %p43 = por %p41, %p42
      %p44 = scmp.ne.s32.totalorder %s35, %s36
      %p45 = scmp.eq.s32.totalorder %s18, 0
      %p46 = por %p44, %p45
      %p47 = scmp.ne.s32.totalorder %s35, %s36
      %p48 = scmp.eq.s32.totalorder %s19, 1
      %p49 = por %p47, %p48
      %p51 = scmp.ne.s32.totalorder %s36, %s50
      %p52 = scmp.eq.s32.totalorder %s19, 0
      %p53 = por %p51, %p52
      %s55 = sadd.s32 %s54, 1
      %p58 = scmp.eq.s32.totalorder %s13, 1
      %p59 = scmp.ne.s32.totalorder %s54, %s56
      %p60 = scmp.eq.s32.totalorder %s13, 0
      %p61 = por %p59, %p60
      %p62 = scmp.ne.s32.totalorder %s54, %s56
      %p63 = scmp.eq.s32.totalorder %s18, 1
      %p64 = por %p62, %p63
      %p65 = scmp.ne.s32.totalorder %s56, %s57
      %p66 = scmp.eq.s32.totalorder %s18, 0
      %p67 = por %p65, %p66
      %p68 = scmp.ne.s32.totalorder %s56, %s57
      %p69 = scmp.eq.s32.totalorder %s19, 1
      %p70 = por %p68, %p69
      %p72 = scmp.ne.s32.totalorder %s57, %s71
      %p73 = scmp.eq.s32.totalorder %s19, 0
      %p74 = por %p72, %p73
      %s76 = sadd.s32 %s75, 1
      %p79 = scmp.eq.s32.totalorder %s13, 1
      %p80 = scmp.ne.s32.totalorder %s75, %s77
      %p81 = scmp.eq.s32.totalorder %s13, 0
      %p82 = por %p80, %p81
      %p83 = scmp.ne.s32.totalorder %s75, %s77
      %p84 = scmp.eq.s32.totalorder %s18, 1
      %p85 = por %p83, %p84
      %p86 = scmp.ne.s32.totalorder %s77, %s78
      %p87 = scmp.eq.s32.totalorder %s18, 0
      %p88 = por %p86, %p87
      %p89 = scmp.ne.s32.totalorder %s77, %s78
      %p90 = scmp.eq.s32.totalorder %s19, 1
      %p91 = por %p89, %p90
      %p93 = scmp.ne.s32.totalorder %s78, %s92
      %p94 = scmp.eq.s32.totalorder %s19, 0
      %p95 = por %p93, %p94
      %s96 = ssub.s32 %s20, %s32
      %s97 = ssub.s32 %s21, %s28
      %s98 = sor.u32 %s96, %s97
      %p99 = scmp.eq.s32.totalorder %s98, 0
      %s101 = sadd.s32 %s100, 1
      %s102 = scalar_select %p99, %s100, %s101
      %p105 = pneg %p99
      %p106 = scmp.eq.s32.totalorder %s13, 1
      %p107 = por %p105, %p106
      %p108 = scmp.ne.s32.totalorder %s100, %s103
      %p109 = scmp.eq.s32.totalorder %s13, 0
      %p110 = por %p108, %p109
      %p111 = scmp.ne.s32.totalorder %s100, %s103
      %p112 = scmp.eq.s32.totalorder %s18, 1
      %p113 = por %p111, %p112
      %p114 = scmp.ne.s32.totalorder %s103, %s104
      %p115 = scmp.eq.s32.totalorder %s18, 0
      %p116 = por %p114, %p115
      %p117 = scmp.ne.s32.totalorder %s103, %s104
      %p118 = scmp.eq.s32.totalorder %s19, 1
      %p119 = por %p117, %p118
      %p121 = scmp.ne.s32.totalorder %s104, %s120
      %p122 = scmp.eq.s32.totalorder %s19, 0
      %p123 = por %p121, %p122
      %s124 = ssub.s32 %s20, %s32
      %s125 = ssub.s32 %s21, %s28
      %s126 = sor.u32 %s124, %s125
      %p127 = scmp.eq.s32.totalorder %s126, 0
      %s129 = sadd.s32 %s128, 1
      %s130 = scalar_select %p127, %s128, %s129
      %p133 = pneg %p127
      %p134 = scmp.eq.s32.totalorder %s13, 1
      %p135 = por %p133, %p134
      %p136 = scmp.ne.s32.totalorder %s128, %s131
      %p137 = scmp.eq.s32.totalorder %s13, 0
      %p138 = por %p136, %p137
      %p139 = scmp.ne.s32.totalorder %s128, %s131
      %p140 = scmp.eq.s32.totalorder %s18, 1
      %p141 = por %p139, %p140
      %p142 = scmp.ne.s32.totalorder %s131, %s132
      %p143 = scmp.eq.s32.totalorder %s18, 0
      %p144 = por %p142, %p143
      %p145 = scmp.ne.s32.totalorder %s131, %s132
      %p146 = scmp.eq.s32.totalorder %s19, 1
      %p147 = por %p145, %p146
      %p149 = scmp.ne.s32.totalorder %s132, %s148
      %p150 = scmp.eq.s32.totalorder %s19, 0
      %p151 = por %p149, %p150
      %p152 = scmp.le.s32.totalorder 1, %s13
      %p153 = scmp.lt.s32.totalorder %s13, 3
      %p154 = pnand %p152, %p153
      %p155 = pneg %p154
      // Predicated region
      $region9: #{tpu_custom_call.1} parent=5 // pred_check
        _
      $region10: #{tpu_custom_call.1} parent=5 // pred_check_branch
        %157 = sbr.rel (%p154) target = $region12
      $region11: #{tpu_custom_call.1} parent=5 // pred_region
        %s158 = ssub.s32 %s13, 1
        // Predicated region
        $region13: #{tpu_custom_call.1} parent=11 // pred_check
          %p159 = pneg %p46
        $region14: #{tpu_custom_call.1} parent=11 // pred_check_branch
          %161 = sbr.rel (%p159) target = $region16
        $region15: #{tpu_custom_call.1} parent=11 // pred_region
          _
        $region16: #{tpu_custom_call.1} parent=11 // pred_fallthru
          _
        // Predicated region
        $region17: #{tpu_custom_call.1} parent=11 // pred_check
          %p162 = pneg %p67
        $region18: #{tpu_custom_call.1} parent=11 // pred_check_branch
          %164 = sbr.rel (%p162) target = $region20
        $region19: #{tpu_custom_call.1} parent=11 // pred_region
          _
        $region20: #{tpu_custom_call.1} parent=11 // pred_fallthru
          _
        // Predicated region
        $region21: #{tpu_custom_call.1} parent=11 // pred_check
          %p165 = pneg %p88
        $region22: #{tpu_custom_call.1} parent=11 // pred_check_branch
          %167 = sbr.rel (%p165) target = $region24
        $region23: #{tpu_custom_call.1} parent=11 // pred_region
          _
        $region24: #{tpu_custom_call.1} parent=11 // pred_fallthru
          _
      $region12: #{tpu_custom_call.1} parent=5 // pred_fallthru
        _
      %p168 = scmp.lt.s32.totalorder %s13, 2
      // Predicated region
      $region25: #{tpu_custom_call.1} parent=5 // pred_check
        %p169 = pneg %p168
      $region26: #{tpu_custom_call.1} parent=5 // pred_check_branch
        %171 = sbr.rel (%p169) target = $region28
      $region27: #{tpu_custom_call.1} parent=5 // pred_region
        // Predicated region
        $region29: #{tpu_custom_call.1} parent=27 // pred_check
          %p172 = pneg %p110
        $region30: #{tpu_custom_call.1} parent=27 // pred_check_branch
          %174 = sbr.rel (%p172) target = $region32
        $region31: #{tpu_custom_call.1} parent=27 // pred_region
          %p175 = scmp.lt.s32.totalorder %s20, 1
          %s176 = scalar_select %p175, %s20, 1
          %p177 = scmp.lt.s32.totalorder %s21, 0
          %s178 = scalar_select %p177, %s21, 0
          %s179 = smul.addr %s176, 4
          %s180 = sadd.s32 %s178, %s179
          %s181 = smul.addr %s180, 4
          %s182 = scalar_lea.vmem %s3, %s181
        $region32: #{tpu_custom_call.1} parent=27 // pred_fallthru
          _
      $region28: #{tpu_custom_call.1} parent=5 // pred_fallthru
        _
      %p183 = scmp.le.s32.totalorder 1, %s13
      %p184 = scmp.lt.s32.totalorder %s13, 3
      %p185 = pnand %p183, %p184
      %p186 = pneg %p185
      // Predicated region
      $region33: #{tpu_custom_call.1} parent=5 // pred_check
        _
      $region34: #{tpu_custom_call.1} parent=5 // pred_check_branch
        %188 = sbr.rel (%p185) target = $region36
      $region35: #{tpu_custom_call.1} parent=5 // pred_region
        %s189 = ssub.s32 %s13, 1
        %p190 = pneg %p46
        %p191 = pneg %p43
        %p192 = pneg %p67
        %p193 = pneg %p64
        %p194 = pneg %p88
        %p195 = pneg %p85
        %p196 = scmp.lt.s32.totalorder %s22, 1
        %s197 = scalar_select %p196, %s22, 1
        %p198 = scmp.lt.s32.totalorder %s23, 0
        %s199 = scalar_select %p198, %s23, 0
        %s200 = smul.addr %s197, 4
        %s201 = sadd.s32 %s199, %s200
        %s202 = smul.addr %s201, 4
        %s203 = scalar_lea.vmem %s3, %s202
        %p204 = pneg %p116
        %p205 = pneg %p113
        %p206 = pneg %p144
        %p207 = pneg %p141
        %s208 = sand.u32 %s131, 1
        %s209 = scalar_lea.sflag [#allocation3], %s208
        %s210 = sand.u32 %s131, 1
        %s211 = smul.addr %s210, 8
        %s212 = scalar_lea.vmem [#allocation2], %s211
        %p213 = scmp.lt.s32.totalorder %s22, 1
        %s214 = scalar_select %p213, %s22, 1
        %p215 = scmp.lt.s32.totalorder %s23, 0
        %s216 = scalar_select %p215, %s23, 0
        %s217 = smul.addr %s214, 4
        %s218 = sadd.s32 %s216, %s217
        %s219 = smul.addr %s218, 4
        %s220 = scalar_lea.vmem %s3, %s219
        %v221 = vld [vmem:[%s0] sm:$0xf]
        %v222 = vld [vmem:[%s1] sm:$0xf]
        %v223 = vld [vmem:[%s220] sm:$0xf]
        %v224 = vld [vmem:[%s220 + $0x4] sm:$0xf]
        %v225 = vld [vmem:[%s220 + $0x8] sm:$0xf]
        %v226 = vld [vmem:[%s220 + $0xc] sm:$0xf]
        %228 = vset.pattern.permute.xlu0 0
        %229 = vperm.xlu0 %228, %v221
        %v230 = vpop.permute.xlu0 %229
        %v232 = vmul.f32 %v223, %v230
        %v233 = vmul.f32 %v224, %v230
        %v234 = vmul.f32 %v225, %v230
        %v235 = vmul.f32 %v226, %v230
        %237 = vset.pattern.permute.xlu0 0
        %238 = vperm.xlu0 %237, %v222
        %v239 = vpop.permute.xlu0 %238
        %v241 = vadd.f32 %v232, %v239
        %v242 = vadd.f32 %v233, %v239
        %v243 = vadd.f32 %v234, %v239
        %v244 = vadd.f32 %v235, %v239
        %v245 = vmax.f32 %v241, 0.0
        %v246 = vmax.f32 %v242, 0.0
        %v247 = vmax.f32 %v243, 0.0
        %v248 = vmax.f32 %v244, 0.0
        %vm249 = vcmask 519168
        %v250 = vsel %vm249, %v245, 0.0
        %v251 = vsel %vm249, %v246, 0.0
        %v252 = vadd.f32 %v250, %v251
        %v253 = vsel %vm249, %v247, 0.0
        %v254 = vadd.f32 %v252, %v253
        %v255 = vsel %vm249, %v248, 0.0
        %v256 = vadd.f32 %v254, %v255
        %v257 = vld [vmem:[%s2] sm:$0xff]
        %vm258 = vcmask 31744
        %v260 = vsel %vm258, %v257, 0
        %vm262 = vcmask 1043456
        %v264 = vsel %vm262, %v256, 0
        %266 = vmatprep.subr.mxu0 0.0
        %267 = vmatpush1.msra.mxu0 %v264
        %268 = vmatprep.subr.mxu0 0.0
        %269 = vmatpush1.msra.mxu0 0.0
        %270 = vmatprep.subr.mxu0 0.0
        %271 = vmatpush1.msra.mxu0 0.0
        %272 = vmatprep.subr.mxu0 0.0
        %273 = vmatpush1.msra.mxu0 0.0
        %274 = vmatprep.subr.mxu0 0.0
        %275 = vmatpush1.msra.mxu0 0.0
        %276 = vmatprep.subr.mxu0 0.0
        %277 = vmatpush1.msra.mxu0 0.0
        %278 = vmatprep.subr.mxu0 0.0
        %279 = vmatpush1.msra.mxu0 0.0
        %280 = vmatprep.subr.mxu0 0.0
        %281 = vmatpush1.msra.mxu0 0.0
        %282 = vmatprep.subr.mxu0 0.0
        %283 = vmatpush1.msra.mxu0 0.0
        %284 = vmatprep.subr.mxu0 0.0
        %285 = vmatpush1.msra.mxu0 0.0
        %286 = vmatprep.subr.mxu0 0.0
        %287 = vmatpush1.msra.mxu0 0.0
        %288 = vmatprep.subr.mxu0 0.0
        %289 = vmatpush1.msra.mxu0 0.0
        %290 = vmatprep.subr.mxu0 0.0
        %291 = vmatpush1.msra.mxu0 0.0
        %292 = vmatprep.subr.mxu0 0.0
        %293 = vmatpush1.msra.mxu0 0.0
        %294 = vmatprep.subr.mxu0 0.0
        %295 = vmatpush1.msra.mxu0 0.0
        %296 = vmatprep.subr.mxu0 0.0
        %297 = vmatpush1.msra.mxu0 0.0
        %298 = vmatprep.subr.mxu0 0.0
        %299 = vmatpush1.msra.mxu0 0.0
        %300 = vmatprep.subr.mxu0 0.0
        %301 = vmatpush1.msra.mxu0 0.0
        %302 = vmatprep.subr.mxu0 0.0
        %303 = vmatpush1.msra.mxu0 0.0
        %304 = vmatprep.subr.mxu0 0.0
        %305 = vmatpush1.msra.mxu0 0.0
        %306 = vmatprep.subr.mxu0 0.0
        %307 = vmatpush1.msra.mxu0 0.0
        %308 = vmatprep.subr.mxu0 0.0
        %309 = vmatpush1.msra.mxu0 0.0
        %310 = vmatprep.subr.mxu0 0.0
        %311 = vmatpush1.msra.mxu0 0.0
        %312 = vmatprep.subr.mxu0 0.0
        %313 = vmatpush1.msra.mxu0 0.0
        %314 = vmatprep.subr.mxu0 0.0
        %315 = vmatpush1.msra.mxu0 0.0
        %316 = vmatprep.subr.mxu0 0.0
        %317 = vmatpush1.msra.mxu0 0.0
        %318 = vmatprep.subr.mxu0 0.0
        %319 = vmatpush1.msra.mxu0 0.0
        %320 = vmatprep.subr.mxu0 0.0
        %321 = vmatpush1.msra.mxu0 0.0
        %322 = vmatprep.subr.mxu0 0.0
        %323 = vmatpush1.msra.mxu0 0.0
        %324 = vmatprep.subr.mxu0 0.0
        %325 = vmatpush1.msra.mxu0 0.0
        %326 = vmatprep.subr.mxu0 0.0
        %327 = vmatpush1.msra.mxu0 0.0
        %328 = vmatprep.subr.mxu0 0.0
        %329 = vmatpush1.msra.mxu0 0.0
        %330 = vmatprep.mubr.f32.mxu0 0.0
        %331 = vmatmul.mubr.f32.gmra.mrb[0].mxu0 %v260
        %v332 = vpop.f32.mrb[0].mxu0
        %v333 = vadd.f32 0.0, %v332
        %v334 = vpop.f32.mrb[0].mxu0
        %335 = vdwg.mxu0
        %vm336 = vcmask 523264
        %337 = vst.msk [vmem:[%s212] sm:$0xff] %vm336, %v333
        %s338 = sand.u32 %s131, 1
        %s339 = scalar_lea.sflag [#allocation3], %s338
        %s340 = sand.u32 %s131, 1
        %s341 = smul.addr %s340, 8
        %s342 = scalar_lea.vmem [#allocation2], %s341
        // Predicated region
        $region37: #{tpu_custom_call.1} parent=35 // pred_check
          %p343 = pneg %p141
        $region38: #{tpu_custom_call.1} parent=35 // pred_check_branch
          %345 = sbr.rel (%p343) target = $region40
        $region39: #{tpu_custom_call.1} parent=35 // pred_region
          %s347 = ssub.s32 128, 128
          %348 = vsyncadd %s339, %s347
          %s349 = sadd.s32 %s23, %s22
          %s350 = smul.addr %s349, 128
          %s351 = scalar_lea.hbm %s4, %s350
          %s353 = sshll.u32 %s342, 4
          %s354 = int_to_ptr.vmem [resolvable:$true] %s353
          %356 = dma.vmem_to_hbm [thread:$0]  %s354, 128, %s351, %s339
        $region40: #{tpu_custom_call.1} parent=35 // pred_fallthru
          _
      $region36: #{tpu_custom_call.1} parent=5 // pred_fallthru
        _
      %p357 = scmp.le.s32.totalorder 2, %s13
      // Predicated region
      $region41: #{tpu_custom_call.1} parent=5 // pred_check
        %p358 = pneg %p357
      $region42: #{tpu_custom_call.1} parent=5 // pred_check_branch
        %360 = sbr.rel (%p358) target = $region44
      $region43: #{tpu_custom_call.1} parent=5 // pred_region
        %s361 = ssub.s32 %s13, 2
        // Predicated region
        $region45: #{tpu_custom_call.1} parent=43 // pred_check
          %p362 = pneg %p147
        $region46: #{tpu_custom_call.1} parent=43 // pred_check_branch
          %364 = sbr.rel (%p362) target = $region48
        $region47: #{tpu_custom_call.1} parent=43 // pred_region
          %s365 = sand.u32 %s132, 1
          %s366 = scalar_lea.sflag [#allocation3], %s365
          %s367 = sand.u32 %s132, 1
          %s368 = smul.addr %s367, 8
          %s369 = scalar_lea.vmem [#allocation2], %s368
          %370 = dma.done %s366, 128
        $region48: #{tpu_custom_call.1} parent=43 // pred_fallthru
          _
      $region44: #{tpu_custom_call.1} parent=5 // pred_fallthru
        _
    $region6: #{tpu_custom_call.1} parent=1 // loop_footer
      %s17 = sadd.s32 1, %s13
    $region7: #{tpu_custom_call.1} parent=1 // loop_footer_branch
      %12 = sbr.rel target = $region3
    $region8: #{tpu_custom_call.1} parent=1 // loop_exit
      _
    %371 = vsyncpa [#allocation3], 1
    %s372 = scalar_lea.sflag [#allocation3], 1
    %373 = vsyncpa %s372, 1

</llo_original>
